<compile_context>
chip_gen: v7x
topology: tpu7x:2x2x1
jax: 0.10.0
libtpu: 0.0.40
codegen_flags: <defaults>
</compile_context>

<pallas_src>
import functools
import math

import jax
import jax.numpy as jnp
from jax.experimental import pallas as pl
from jax.experimental.pallas import tpu as pltpu

_INV_SQRT2 = 1.0 / math.sqrt(2.0)


def _round_up(x, m):
    return ((x + m - 1) // m) * m


def _gelu_exact(y):
    # Exact (erf) GELU — matches PyTorch nn.GELU() default.  GELU(0) == 0, so
    # zero-padded lanes remain exactly zero through every layer.
    return 0.5 * y * (1.0 + jax.lax.erf(y * _INV_SQRT2))


def _fused_mlp_kernel(*refs, num_mid):
    """One grid step = one batch tile pushed through the whole MLP.

    refs layout: x, w_first, b_first, [w_mid, b_mid,] w_last, b_last, out.
    Weights are bf16 (MXU-native); accumulate / bias add / GELU stay f32.
    """
    if num_mid > 0:
        x_ref, wf_ref, bf_ref, wm_ref, bm_ref, wl_ref, bl_ref, o_ref = refs
    else:
        x_ref, wf_ref, bf_ref, wl_ref, bl_ref, o_ref = refs
        wm_ref = bm_ref = None

    h = x_ref[...]                                            # (TB, Din_pad) f32

    # First layer + GELU.
    y = jnp.dot(h.astype(jnp.bfloat16), wf_ref[...],
                preferred_element_type=jnp.float32) + bf_ref[...]
    h = _gelu_exact(y)

    # Hidden->hidden layers (static unroll; num_mid is small).
    for l in range(num_mid):
        y = jnp.dot(h.astype(jnp.bfloat16), wm_ref[l],
                    preferred_element_type=jnp.float32) + bm_ref[l]
        h = _gelu_exact(y)

    # Last layer, no activation.
    y = jnp.dot(h.astype(jnp.bfloat16), wl_ref[...],
                preferred_element_type=jnp.float32) + bl_ref[...]
    o_ref[...] = y.astype(o_ref.dtype)


def prepare_mlp_params(params):
    """Pad / stack / cast the weights ONCE (hoisted out of the per-call path).

    params: list of (W [in, out], b [out]) with layout
        [(input_dim, hidden), (hidden, hidden) * (num_layers - 1), (hidden, output)]
    """
    assert len(params) >= 2, "MLP has at least two linear layers"
    input_dim = params[0][0].shape[0]
    hidden_dim = params[0][0].shape[1]
    output_dim = params[-1][0].shape[1]
    num_mid = len(params) - 2

    din_p = _round_up(input_dim, 128)
    dh_p = _round_up(hidden_dim, 128)
    dout_p = _round_up(output_dim, 128)

    def pad_w(w, rp, cp):
        r, c = w.shape
        return jnp.zeros((rp, cp), jnp.bfloat16).at[:r, :c].set(w.astype(jnp.bfloat16))

    def pad_b(b, cp):
        b = jnp.reshape(b, (-1,)).astype(jnp.float32)
        return jnp.zeros((1, cp), jnp.float32).at[0, : b.shape[0]].set(b)

    w_first = pad_w(params[0][0], din_p, dh_p)
    b_first = pad_b(params[0][1], dh_p)
    w_last = pad_w(params[-1][0], dh_p, dout_p)
    b_last = pad_b(params[-1][1], dout_p)

    if num_mid > 0:
        w_mid = jnp.stack([pad_w(w, dh_p, dh_p) for w, _ in params[1:-1]])
        b_mid = jnp.stack([pad_b(b, dh_p) for _, b in params[1:-1]])
    else:
        w_mid = b_mid = None

    return dict(
        w_first=w_first, b_first=b_first, w_mid=w_mid, b_mid=b_mid,
        w_last=w_last, b_last=b_last,
        input_dim=input_dim, hidden_dim=hidden_dim, output_dim=output_dim,
        din_p=din_p, dh_p=dh_p, dout_p=dout_p, num_mid=num_mid,
    )


def mlp_forward(x, prepared):
    """x: [B, input_dim] f32; prepared: output of prepare_mlp_params."""
    B, input_dim = x.shape
    assert input_dim == prepared["input_dim"]
    din_p, dh_p, dout_p = prepared["din_p"], prepared["dh_p"], prepared["dout_p"]
    num_mid = prepared["num_mid"]
    output_dim = prepared["output_dim"]

    # Batch tiling: lane-dense rows (mult. of 8).  Large batches get big tiles
    # (better HBM roofline, feeds the 256-wide MXU) but we keep >= 2 grid steps
    # when B >= 16 so both TensorCores on v7x get work (no-op on v5e/v6e).
    if B < 16:
        TB = _round_up(B, 8)
    else:
        TB = min(512, _round_up(-(-B // 2), 8))
    B_pad = _round_up(B, TB)
    grid = (B_pad // TB,)

    x_pad = jnp.zeros((B_pad, din_p), jnp.float32).at[:B, :input_dim].set(
        x.astype(jnp.float32))

    # Explicit VMEM budget so the default scoped limit (16/32 MiB) never
    # throttles a config that fits physical VMEM.  Weights may be double-
    # buffered by the pipeliner, hence the factor 2 on the resident stacks.
    w_bytes = 2 * (din_p * dh_p + num_mid * dh_p * dh_p + dh_p * dout_p)      # bf16
    b_bytes = 4 * ((num_mid + 1) * dh_p + dout_p)                             # f32
    io_bytes = 4 * 2 * TB * (din_p + dout_p)                  # double-buffered tiles
    live_bytes = 4 * 2 * TB * max(din_p, dh_p, dout_p)        # live intermediates
    vmem_limit = min(
        int(1.5 * (2 * (w_bytes + b_bytes) + io_bytes + live_bytes)) + (4 << 20),
        96 << 20,
    )
    # TODO(synk): on v7x (64 MiB VMEM), if the bf16 weight stack alone exceeds
    # ~48 MiB, stream the hidden-layer weights in column blocks (emit_pipeline)
    # instead of keeping the whole stack resident.

    cost = pl.CostEstimate(
        flops=2 * B_pad * (din_p * dh_p + num_mid * dh_p * dh_p + dh_p * dout_p),
        transcendentals=B_pad * dh_p * (num_mid + 1),
        bytes_accessed=4 * B_pad * (din_p + dout_p) + w_bytes + b_bytes,
    )

    inputs = [x_pad, prepared["w_first"], prepared["b_first"]]
    in_specs = [
        pl.BlockSpec((TB, din_p), lambda i: (i, 0)),          # activations: batch-tiled
        pl.BlockSpec((din_p, dh_p), lambda i: (0, 0)),        # weights: VMEM-resident
        pl.BlockSpec((1, dh_p), lambda i: (0, 0)),
    ]
    if num_mid > 0:
        inputs += [prepared["w_mid"], prepared["b_mid"]]
        in_specs += [
            pl.BlockSpec((num_mid, dh_p, dh_p), lambda i: (0, 0, 0)),
            pl.BlockSpec((num_mid, 1, dh_p), lambda i: (0, 0, 0)),
        ]
    inputs += [prepared["w_last"], prepared["b_last"]]
    in_specs += [
        pl.BlockSpec((dh_p, dout_p), lambda i: (0, 0)),
        pl.BlockSpec((1, dout_p), lambda i: (0, 0)),
    ]

    kernel = functools.partial(_fused_mlp_kernel, num_mid=num_mid)
    out_pad = pl.pallas_call(
        kernel,
        out_shape=jax.ShapeDtypeStruct((B_pad, dout_p), jnp.float32),
        grid=grid,
        in_specs=in_specs,
        out_specs=pl.BlockSpec((TB, dout_p), lambda i: (i, 0)),
        compiler_params=pltpu.CompilerParams(
            dimension_semantics=("parallel",),
            vmem_limit_bytes=vmem_limit,
        ),
        cost_estimate=cost,
    )(*inputs)

    return out_pad[:B, :output_dim]


def init_mlp_params(key, num_layers, input_dim, hidden_dim, output_dim):
    """Mimics nn.Linear's U(-1/sqrt(fan_in), 1/sqrt(fan_in)); W stored [in, out]."""
    dims = [input_dim] + [hidden_dim] * num_layers + [output_dim]
    params = []
    for i in range(len(dims) - 1):
        fan_in, fan_out = dims[i], dims[i + 1]
        key, wk, bk = jax.random.split(key, 3)
        bound = 1.0 / math.sqrt(fan_in)
        w = jax.random.uniform(wk, (fan_in, fan_out), jnp.float32, -bound, bound)
        b = jax.random.uniform(bk, (fan_out,), jnp.float32, -bound, bound)
        params.append((w, b))
    return params


def mlp_reference(x, params):
    """Pure-JAX f32 reference (unpadded) for correctness check."""
    n = len(params)
    for i, (w, b) in enumerate(params):
        x = x @ w + b
        if i != n - 1:
            x = _gelu_exact(x)
    return x


if __name__ == "__main__":
    num_layers = 3
    input_dim = 16
    hidden_dim = 32
    output_dim = 8
    batch = 8

    key = jax.random.PRNGKey(0)
    pkey, xkey = jax.random.split(key)
    params = init_mlp_params(pkey, num_layers, input_dim, hidden_dim, output_dim)
    x = jax.random.normal(xkey, (batch, input_dim), jnp.float32)

    prepared = prepare_mlp_params(params)       # one-time host-side prep
    out = mlp_forward(x, prepared)
    out = jax.block_until_ready(out)

    ref = mlp_reference(x, params)
    assert out.shape == (batch, output_dim), out.shape
    # Tolerance relaxed vs 1e-5: MXU operands are bf16 (f32 accumulation).
    assert jnp.allclose(out, ref, atol=2e-2, rtol=2e-2), "mismatch vs reference"

    print("KERNEL_OK")
</pallas_src>

<mosaic_0001>
module attributes {stable_mosaic.version = 11 : i64} {
  func.func @_fused_mlp_kernel(%arg0: i32, %arg1: memref<8x128xf32, #tpu.memory_space<vmem>>, %arg2: memref<128x128xbf16, #tpu.memory_space<vmem>>, %arg3: memref<1x128xf32, #tpu.memory_space<vmem>>, %arg4: memref<2x128x128xbf16, #tpu.memory_space<vmem>>, %arg5: memref<2x1x128xf32, #tpu.memory_space<vmem>>, %arg6: memref<128x128xbf16, #tpu.memory_space<vmem>>, %arg7: memref<1x128xf32, #tpu.memory_space<vmem>>, %arg8: memref<8x128xf32, #tpu.memory_space<vmem>>) attributes {dimension_semantics = [#tpu.dimension_semantics<parallel>], iteration_bounds = array<i64: 1>, scalar_prefetch = 0 : i64, scratch_operands = 0 : i64, tpu.core_type = #tpu.core_type<tc>, window_params = [{transform_indices = @transform_0, window_bounds = array<i64: 8, 128>}, {pipeline_mode = #tpu.pipeline_mode<synchronous>, transform_indices = @transform_1, window_bounds = array<i64: 128, 128>}, {pipeline_mode = #tpu.pipeline_mode<synchronous>, transform_indices = @transform_2, window_bounds = array<i64: 1, 128>}, {pipeline_mode = #tpu.pipeline_mode<synchronous>, transform_indices = @transform_3, window_bounds = array<i64: 2, 128, 128>}, {pipeline_mode = #tpu.pipeline_mode<synchronous>, transform_indices = @transform_4, window_bounds = array<i64: 2, 1, 128>}, {pipeline_mode = #tpu.pipeline_mode<synchronous>, transform_indices = @transform_5, window_bounds = array<i64: 128, 128>}, {pipeline_mode = #tpu.pipeline_mode<synchronous>, transform_indices = @transform_6, window_bounds = array<i64: 1, 128>}, {transform_indices = @transform_7, window_bounds = array<i64: 8, 128>}]} {
    %c0 = arith.constant 0 : index
    %c0_0 = arith.constant 0 : index
    %0 = vector.load %arg1[%c0, %c0_0] : memref<8x128xf32, #tpu.memory_space<vmem>>, vector<8x128xf32>
    %1 = arith.truncf %0 : vector<8x128xf32> to vector<8x128xbf16>
    %c0_1 = arith.constant 0 : index
    %c0_2 = arith.constant 0 : index
    %2 = vector.load %arg2[%c0_1, %c0_2] : memref<128x128xbf16, #tpu.memory_space<vmem>>, vector<128x128xbf16>
    %cst = arith.constant dense<0.000000e+00> : vector<8x128xf32>
    %3 = tpu.matmul %1, %2, %cst {dimension_numbers = #tpu.dot_dimension_numbers<[1], [0], [0], [1], [0, 0, 1, 1], [], []>} : vector<8x128xbf16>, vector<128x128xbf16>, vector<8x128xf32> -> vector<8x128xf32>
    %c0_3 = arith.constant 0 : index
    %c0_4 = arith.constant 0 : index
    %4 = vector.load %arg3[%c0_3, %c0_4] : memref<1x128xf32, #tpu.memory_space<vmem>>, vector<1x128xf32>
    %5 = vector.broadcast %4 : vector<1x128xf32> to vector<8x128xf32>
    %6 = arith.addf %3, %5 : vector<8x128xf32>
    %cst_5 = arith.constant 5.000000e-01 : f32
    %7 = vector.broadcast %cst_5 : f32 to vector<8x128xf32>
    %8 = arith.mulf %7, %6 : vector<8x128xf32>
    %cst_6 = arith.constant 0.707106769 : f32
    %9 = vector.broadcast %cst_6 : f32 to vector<8x128xf32>
    %10 = arith.mulf %6, %9 : vector<8x128xf32>
    %11 = math.erf %10 : vector<8x128xf32>
    %cst_7 = arith.constant 1.000000e+00 : f32
    %12 = vector.broadcast %cst_7 : f32 to vector<8x128xf32>
    %13 = arith.addf %12, %11 : vector<8x128xf32>
    %14 = arith.mulf %8, %13 : vector<8x128xf32>
    %15 = arith.truncf %14 : vector<8x128xf32> to vector<8x128xbf16>
    %c0_8 = arith.constant 0 : index
    %c0_9 = arith.constant 0 : index
    %c0_10 = arith.constant 0 : index
    %16 = vector.load %arg4[%c0_8, %c0_9, %c0_10] : memref<2x128x128xbf16, #tpu.memory_space<vmem>>, vector<1x128x128xbf16>
    %17 = vector.shape_cast %16 : vector<1x128x128xbf16> to vector<128x128xbf16>
    %cst_11 = arith.constant dense<0.000000e+00> : vector<8x128xf32>
    %18 = tpu.matmul %15, %17, %cst_11 {dimension_numbers = #tpu.dot_dimension_numbers<[1], [0], [0], [1], [0, 0, 1, 1], [], []>} : vector<8x128xbf16>, vector<128x128xbf16>, vector<8x128xf32> -> vector<8x128xf32>
    %c0_12 = arith.constant 0 : index
    %c0_13 = arith.constant 0 : index
    %c0_14 = arith.constant 0 : index
    %19 = vector.load %arg5[%c0_12, %c0_13, %c0_14] : memref<2x1x128xf32, #tpu.memory_space<vmem>>, vector<1x1x128xf32>
    %20 = vector.shape_cast %19 : vector<1x1x128xf32> to vector<1x128xf32>
    %21 = vector.broadcast %20 : vector<1x128xf32> to vector<8x128xf32>
    %22 = arith.addf %18, %21 : vector<8x128xf32>
    %cst_15 = arith.constant 5.000000e-01 : f32
    %23 = vector.broadcast %cst_15 : f32 to vector<8x128xf32>
    %24 = arith.mulf %23, %22 : vector<8x128xf32>
    %cst_16 = arith.constant 0.707106769 : f32
    %25 = vector.broadcast %cst_16 : f32 to vector<8x128xf32>
    %26 = arith.mulf %22, %25 : vector<8x128xf32>
    %27 = math.erf %26 : vector<8x128xf32>
    %cst_17 = arith.constant 1.000000e+00 : f32
    %28 = vector.broadcast %cst_17 : f32 to vector<8x128xf32>
    %29 = arith.addf %28, %27 : vector<8x128xf32>
    %30 = arith.mulf %24, %29 : vector<8x128xf32>
    %31 = arith.truncf %30 : vector<8x128xf32> to vector<8x128xbf16>
    %c1 = arith.constant 1 : index
    %c0_18 = arith.constant 0 : index
    %c0_19 = arith.constant 0 : index
    %32 = vector.load %arg4[%c1, %c0_18, %c0_19] : memref<2x128x128xbf16, #tpu.memory_space<vmem>>, vector<1x128x128xbf16>
    %33 = vector.shape_cast %32 : vector<1x128x128xbf16> to vector<128x128xbf16>
    %cst_20 = arith.constant dense<0.000000e+00> : vector<8x128xf32>
    %34 = tpu.matmul %31, %33, %cst_20 {dimension_numbers = #tpu.dot_dimension_numbers<[1], [0], [0], [1], [0, 0, 1, 1], [], []>} : vector<8x128xbf16>, vector<128x128xbf16>, vector<8x128xf32> -> vector<8x128xf32>
    %c1_21 = arith.constant 1 : index
    %c0_22 = arith.constant 0 : index
    %c0_23 = arith.constant 0 : index
    %35 = vector.load %arg5[%c1_21, %c0_22, %c0_23] : memref<2x1x128xf32, #tpu.memory_space<vmem>>, vector<1x1x128xf32>
    %36 = vector.shape_cast %35 : vector<1x1x128xf32> to vector<1x128xf32>
    %37 = vector.broadcast %36 : vector<1x128xf32> to vector<8x128xf32>
    %38 = arith.addf %34, %37 : vector<8x128xf32>
    %cst_24 = arith.constant 5.000000e-01 : f32
    %39 = vector.broadcast %cst_24 : f32 to vector<8x128xf32>
    %40 = arith.mulf %39, %38 : vector<8x128xf32>
    %cst_25 = arith.constant 0.707106769 : f32
    %41 = vector.broadcast %cst_25 : f32 to vector<8x128xf32>
    %42 = arith.mulf %38, %41 : vector<8x128xf32>
    %43 = math.erf %42 : vector<8x128xf32>
    %cst_26 = arith.constant 1.000000e+00 : f32
    %44 = vector.broadcast %cst_26 : f32 to vector<8x128xf32>
    %45 = arith.addf %44, %43 : vector<8x128xf32>
    %46 = arith.mulf %40, %45 : vector<8x128xf32>
    %47 = arith.truncf %46 : vector<8x128xf32> to vector<8x128xbf16>
    %c0_27 = arith.constant 0 : index
    %c0_28 = arith.constant 0 : index
    %48 = vector.load %arg6[%c0_27, %c0_28] : memref<128x128xbf16, #tpu.memory_space<vmem>>, vector<128x128xbf16>
    %cst_29 = arith.constant dense<0.000000e+00> : vector<8x128xf32>
    %49 = tpu.matmul %47, %48, %cst_29 {dimension_numbers = #tpu.dot_dimension_numbers<[1], [0], [0], [1], [0, 0, 1, 1], [], []>} : vector<8x128xbf16>, vector<128x128xbf16>, vector<8x128xf32> -> vector<8x128xf32>
    %c0_30 = arith.constant 0 : index
    %c0_31 = arith.constant 0 : index
    %50 = vector.load %arg7[%c0_30, %c0_31] : memref<1x128xf32, #tpu.memory_space<vmem>>, vector<1x128xf32>
    %51 = vector.broadcast %50 : vector<1x128xf32> to vector<8x128xf32>
    %52 = arith.addf %49, %51 : vector<8x128xf32>
    %c0_32 = arith.constant 0 : index
    %c0_33 = arith.constant 0 : index
    %53 = vector.load %arg8[%c0_32, %c0_33] : memref<8x128xf32, #tpu.memory_space<vmem>>, vector<8x128xf32>
    tpu.vector_store %arg8[%c0_32, %c0_33], %52 {strides = array<i32>} : memref<8x128xf32, #tpu.memory_space<vmem>>, vector<8x128xf32>,
    return
  }
  func.func @transform_0(%arg0: i32) -> (i32, i32) {
    %c0_i32 = arith.constant 0 : i32
    %c0_i32_0 = arith.constant 0 : i32
    return %arg0, %c0_i32 : i32, i32
  }
  func.func @transform_1(%arg0: i32) -> (i32, i32) {
    %c0_i32 = arith.constant 0 : i32
    %c0_i32_0 = arith.constant 0 : i32
    %c0_i32_1 = arith.constant 0 : i32
    return %c0_i32, %c0_i32_0 : i32, i32
  }
  func.func @transform_2(%arg0: i32) -> (i32, i32) {
    %c0_i32 = arith.constant 0 : i32
    %c0_i32_0 = arith.constant 0 : i32
    %c0_i32_1 = arith.constant 0 : i32
    return %c0_i32, %c0_i32_0 : i32, i32
  }
  func.func @transform_3(%arg0: i32) -> (i32, i32, i32) {
    %c0_i32 = arith.constant 0 : i32
    %c0_i32_0 = arith.constant 0 : i32
    %c0_i32_1 = arith.constant 0 : i32
    %c0_i32_2 = arith.constant 0 : i32
    return %c0_i32, %c0_i32_0, %c0_i32_1 : i32, i32, i32
  }
  func.func @transform_4(%arg0: i32) -> (i32, i32, i32) {
    %c0_i32 = arith.constant 0 : i32
    %c0_i32_0 = arith.constant 0 : i32
    %c0_i32_1 = arith.constant 0 : i32
    %c0_i32_2 = arith.constant 0 : i32
    return %c0_i32, %c0_i32_0, %c0_i32_1 : i32, i32, i32
  }
  func.func @transform_5(%arg0: i32) -> (i32, i32) {
    %c0_i32 = arith.constant 0 : i32
    %c0_i32_0 = arith.constant 0 : i32
    %c0_i32_1 = arith.constant 0 : i32
    return %c0_i32, %c0_i32_0 : i32, i32
  }
  func.func @transform_6(%arg0: i32) -> (i32, i32) {
    %c0_i32 = arith.constant 0 : i32
    %c0_i32_0 = arith.constant 0 : i32
    %c0_i32_1 = arith.constant 0 : i32
    return %c0_i32, %c0_i32_0 : i32, i32
  }
  func.func @transform_7(%arg0: i32) -> (i32, i32) {
    %c0_i32 = arith.constant 0 : i32
    %c0_i32_0 = arith.constant 0 : i32
    return %arg0, %c0_i32 : i32, i32
  }
}

</mosaic_0001>

<llo_original>
// kernel: tpu_custom_call.1
$region0: #{tpu_custom_call.1}
  #allocation0 [shape = 'u32[]', space=smem, size = 0x4, offset = 0x4, fixed_abs, tag = 'smem constant byte address 0x4 - core index']
  #allocation1 [shape = 'u32[144,128]{1,0:T(1,128)}', space=vmem, size = 0x12000, scoped, tag = 'internal scratch']
  %s0 = inlined_call_operand.hbm [shape: f32[8,128], index: 0, kind: input, shape index: {}]
  %s1 = inlined_call_operand.hbm [shape: bf16[128,128], index: 1, kind: input, shape index: {}]
  %s2 = inlined_call_operand.vmem [shape: f32[1,128], index: 2, kind: input, shape index: {}]
  %s3 = inlined_call_operand.hbm [shape: bf16[2,128,128], index: 3, kind: input, shape index: {}]
  %s4 = inlined_call_operand.vmem [shape: f32[2,1,128], index: 4, kind: input, shape index: {}]
  %s5 = inlined_call_operand.hbm [shape: bf16[128,128], index: 5, kind: input, shape index: {}]
  %s6 = inlined_call_operand.vmem [shape: f32[1,128], index: 6, kind: input, shape index: {}]
  %s7 = inlined_call_operand.hbm [shape: f32[8,128], index: 7, kind: output, shape index: {}]
  %s8 = sld [smem:[#allocation0]]
  $region54: #{tpu_custom_call.1} parent=0
    _
  %s10 = ssub.s32 1, %s8
  %s11 = scalar_select 0, %s10, %s8
  $region1: #{tpu_custom_call.1} parent=0
    #allocation2 [shape = 'u8[4096]{0}', space=vmem, size = 0x1000, scoped, tag = 'input window, operand 0, single buffered']
    #allocation3 [shape = 's32[1]{0}', space=sflag, size = 0x4, scoped, tag = 'scoped memory for tpu_custom_call.1']
    #allocation4 [shape = 's32[1]{0}', space=sflag, size = 0x4, scoped, tag = 'scoped memory for tpu_custom_call.1']
    #allocation5 [shape = 'u8[32768]{0}', space=vmem, size = 0x8000, scoped, tag = 'input window, operand 1, single buffered']
    #allocation6 [shape = 's32[1]{0}', space=sflag, size = 0x4, scoped, tag = 'scoped memory for tpu_custom_call.1']
    #allocation7 [shape = 'u8[65536]{0}', space=vmem, size = 0x10000, scoped, tag = 'input window, operand 3, single buffered']
    #allocation8 [shape = 'u8[32768]{0}', space=vmem, size = 0x8000, scoped, tag = 'input window, operand 5, single buffered']
    #allocation9 [shape = 's32[1]{0}', space=sflag, size = 0x4, scoped, tag = 'scoped memory for tpu_custom_call.1']
    #allocation10 [shape = 'u8[4096]{0}', space=vmem, size = 0x1000, scoped, tag = 'output window, operand 0, single buffered']
    %12 = vsyncpa [#allocation3], 0
    %13 = vsyncpa [#allocation6], 0
    %14 = vsyncpa [#allocation9], 0
    %15 = vsyncpa [#allocation4], 0
    // Predicated region
    $region2: #{tpu_custom_call.1} parent=1 // pred_check
      _
    $region3: #{tpu_custom_call.1} parent=1 // pred_check_branch
      %17 = sbr.rel (0) target = $region5
    $region4: #{tpu_custom_call.1} parent=1 // pred_region
      %s19 = ssub.s32 128, 128
      %20 = vsyncadd [#allocation3], %s19
      %s22 = sshll.u32 [#allocation2], 4
      %s23 = int_to_ptr.vmem [resolvable:$true] %s22
      %25 = dma.hbm_to_vmem [thread:$0]  %s0, 128, %s23, [#allocation3]
    $region5: #{tpu_custom_call.1} parent=1 // pred_fallthru
      _
    // Predicated region
    $region6: #{tpu_custom_call.1} parent=1 // pred_check
      _
    $region7: #{tpu_custom_call.1} parent=1 // pred_check_branch
      %27 = sbr.rel (0) target = $region9
    $region8: #{tpu_custom_call.1} parent=1 // pred_region
      %s29 = ssub.s32 1024, 1024
      %30 = vsyncadd [#allocation6], %s29
      %s31 = sshll.u32 [#allocation5], 4
      %s32 = int_to_ptr.vmem [resolvable:$true] %s31
      %37 = dma.hbm_to_vmem [thread:$0]  %s1, 1024, %s32, [#allocation6], 64, 64, 4
    $region9: #{tpu_custom_call.1} parent=1 // pred_fallthru
      _
    // Predicated region
    $region10: #{tpu_custom_call.1} parent=1 // pred_check
      _
    $region11: #{tpu_custom_call.1} parent=1 // pred_check_branch
      %39 = sbr.rel (0) target = $region13
    $region12: #{tpu_custom_call.1} parent=1 // pred_region
      _
    $region13: #{tpu_custom_call.1} parent=1 // pred_fallthru
      _
    // Predicated region
    $region14: #{tpu_custom_call.1} parent=1 // pred_check
      _
    $region15: #{tpu_custom_call.1} parent=1 // pred_check_branch
      %41 = sbr.rel (0) target = $region17
    $region16: #{tpu_custom_call.1} parent=1 // pred_region
      %s43 = ssub.s32 2048, 2048
      %44 = vsyncadd [#allocation6], %s43
      %s45 = sshll.u32 [#allocation7], 4
      %s46 = int_to_ptr.vmem [resolvable:$true] %s45
      %51 = dma.hbm_to_vmem [thread:$0]  %s3, 2048, %s46, [#allocation6], 64, 64, 4
    $region17: #{tpu_custom_call.1} parent=1 // pred_fallthru
      _
    // Predicated region
    $region18: #{tpu_custom_call.1} parent=1 // pred_check
      _
    $region19: #{tpu_custom_call.1} parent=1 // pred_check_branch
      %53 = sbr.rel (0) target = $region21
    $region20: #{tpu_custom_call.1} parent=1 // pred_region
      _
    $region21: #{tpu_custom_call.1} parent=1 // pred_fallthru
      _
    // Predicated region
    $region22: #{tpu_custom_call.1} parent=1 // pred_check
      _
    $region23: #{tpu_custom_call.1} parent=1 // pred_check_branch
      %55 = sbr.rel (0) target = $region25
    $region24: #{tpu_custom_call.1} parent=1 // pred_region
      %s57 = ssub.s32 1024, 1024
      %58 = vsyncadd [#allocation9], %s57
      %s59 = sshll.u32 [#allocation8], 4
      %s60 = int_to_ptr.vmem [resolvable:$true] %s59
      %65 = dma.hbm_to_vmem [thread:$0]  %s5, 1024, %s60, [#allocation9], 64, 64, 4
    $region25: #{tpu_custom_call.1} parent=1 // pred_fallthru
      _
    // Predicated region
    $region26: #{tpu_custom_call.1} parent=1 // pred_check
      _
    $region27: #{tpu_custom_call.1} parent=1 // pred_check_branch
      %67 = sbr.rel (0) target = $region29
    $region28: #{tpu_custom_call.1} parent=1 // pred_region
      _
    $region29: #{tpu_custom_call.1} parent=1 // pred_fallthru
      _
    // Predicated region
    $region30: #{tpu_custom_call.1} parent=1 // pred_check
      _
    $region31: #{tpu_custom_call.1} parent=1 // pred_check_branch
      %69 = sbr.rel (0) target = $region33
    $region32: #{tpu_custom_call.1} parent=1 // pred_region
      %70 = dma.done [#allocation3], 128
    $region33: #{tpu_custom_call.1} parent=1 // pred_fallthru
      _
    // Predicated region
    $region34: #{tpu_custom_call.1} parent=1 // pred_check
      _
    $region35: #{tpu_custom_call.1} parent=1 // pred_check_branch
      %72 = sbr.rel (0) target = $region37
    $region36: #{tpu_custom_call.1} parent=1 // pred_region
      %73 = dma.done [#allocation6], 1024
    $region37: #{tpu_custom_call.1} parent=1 // pred_fallthru
      _
    // Predicated region
    $region38: #{tpu_custom_call.1} parent=1 // pred_check
      _
    $region39: #{tpu_custom_call.1} parent=1 // pred_check_branch
      %75 = sbr.rel (0) target = $region41
    $region40: #{tpu_custom_call.1} parent=1 // pred_region
      %76 = dma.done [#allocation6], 2048
    $region41: #{tpu_custom_call.1} parent=1 // pred_fallthru
      _
    // Predicated region
    $region42: #{tpu_custom_call.1} parent=1 // pred_check
      _
    $region43: #{tpu_custom_call.1} parent=1 // pred_check_branch
      %78 = sbr.rel (0) target = $region45
    $region44: #{tpu_custom_call.1} parent=1 // pred_region
      %79 = dma.done [#allocation9], 1024
    $region45: #{tpu_custom_call.1} parent=1 // pred_fallthru
      _
    %v81 = vld [vmem:[#allocation2] sm:$0xff]
    %v82 = vpack.c.bf16 %v81, %v81
    %v83 = vld [vmem:[#allocation5] sm:$0xf]
    %v84 = vld [vmem:[#allocation5 + $0x4] sm:$0xf]
    %v85 = vld [vmem:[#allocation5 + $0x8] sm:$0xf]
    %v86 = vld [vmem:[#allocation5 + $0xc] sm:$0xf]
    %v87 = vld [vmem:[#allocation5 + $0x10] sm:$0xf]
    %v88 = vld [vmem:[#allocation5 + $0x14] sm:$0xf]
    %v89 = vld [vmem:[#allocation5 + $0x18] sm:$0xf]
    %v90 = vld [vmem:[#allocation5 + $0x1c] sm:$0xf]
    %v91 = vld [vmem:[#allocation5 + $0x20] sm:$0xf]
    %v92 = vld [vmem:[#allocation5 + $0x24] sm:$0xf]
    %v93 = vld [vmem:[#allocation5 + $0x28] sm:$0xf]
    %v94 = vld [vmem:[#allocation5 + $0x2c] sm:$0xf]
    %v95 = vld [vmem:[#allocation5 + $0x30] sm:$0xf]
    %v96 = vld [vmem:[#allocation5 + $0x34] sm:$0xf]
    %v97 = vld [vmem:[#allocation5 + $0x38] sm:$0xf]
    %v98 = vld [vmem:[#allocation5 + $0x3c] sm:$0xf]
    %v99 = vld [vmem:[%s2] sm:$0x1]
    %v101 = vlaneseq
    %v102 = vshrl.u32 %v101, 7
    %v103 = vsub.s32 0, %v102
    %v104 = vrot.slane %v99, %v103
    %v122 = vunpack.c.l.b16 %v83
    %v123 = vunpack.c.l.b16 %v84
    %v124 = vunpack.c.l.b16 %v85
    %v125 = vunpack.c.l.b16 %v86
    %v126 = vunpack.c.l.b16 %v87
    %v127 = vunpack.c.l.b16 %v88
    %v128 = vunpack.c.l.b16 %v89
    %v129 = vunpack.c.l.b16 %v90
    %v130 = vunpack.c.l.b16 %v91
    %v131 = vunpack.c.l.b16 %v92
    %v132 = vunpack.c.l.b16 %v93
    %v133 = vunpack.c.l.b16 %v94
    %v134 = vunpack.c.l.b16 %v95
    %v135 = vunpack.c.l.b16 %v96
    %v136 = vunpack.c.l.b16 %v97
    %v137 = vunpack.c.l.b16 %v98
    %v138 = vpack.c.b16 %v123, %v122
    %v139 = vpack.c.b16 %v125, %v124
    %v140 = vpack.c.b16 %v127, %v126
    %v141 = vpack.c.b16 %v129, %v128
    %v142 = vpack.c.b16 %v131, %v130
    %v143 = vpack.c.b16 %v133, %v132
    %v144 = vpack.c.b16 %v135, %v134
    %v145 = vpack.c.b16 %v137, %v136
    %154 = vmatprep.subr.bf16.mxu0 0
    %155 = vmatpush1.bf16.msra.mxu0 %v138
    %156 = vmatprep.subr.bf16.mxu0 0
    %157 = vmatpush1.bf16.msra.mxu0 %v139
    %158 = vmatprep.subr.bf16.mxu0 0
    %159 = vmatpush1.bf16.msra.mxu0 %v140
    %160 = vmatprep.subr.bf16.mxu0 0
    %161 = vmatpush1.bf16.msra.mxu0 %v141
    %162 = vmatprep.subr.bf16.mxu0 0
    %163 = vmatpush1.bf16.msra.mxu0 %v142
    %164 = vmatprep.subr.bf16.mxu0 0
    %165 = vmatpush1.bf16.msra.mxu0 %v143
    %166 = vmatprep.subr.bf16.mxu0 0
    %167 = vmatpush1.bf16.msra.mxu0 %v144
    %168 = vmatprep.subr.bf16.mxu0 0
    %169 = vmatpush1.bf16.msra.mxu0 %v145
    %170 = vmatprep.subr.bf16.mxu0 0
    %171 = vmatpush1.bf16.msra.mxu0 0
    %172 = vmatprep.subr.bf16.mxu0 0
    %173 = vmatpush1.bf16.msra.mxu0 0
    %174 = vmatprep.subr.bf16.mxu0 0
    %175 = vmatpush1.bf16.msra.mxu0 0
    %176 = vmatprep.subr.bf16.mxu0 0
    %177 = vmatpush1.bf16.msra.mxu0 0
    %178 = vmatprep.subr.bf16.mxu0 0
    %179 = vmatpush1.bf16.msra.mxu0 0
    %180 = vmatprep.subr.bf16.mxu0 0
    %181 = vmatpush1.bf16.msra.mxu0 0
    %182 = vmatprep.subr.bf16.mxu0 0
    %183 = vmatpush1.bf16.msra.mxu0 0
    %184 = vmatprep.subr.bf16.mxu0 0
    %185 = vmatpush1.bf16.msra.mxu0 0
    %186 = vmatprep.mubr.bf16.mxu0 0
    %187 = vmatmul.mubr.bf16.gmra.mrb[0].mxu0 %v82
    %v188 = vpop.f32.mrb[0].mxu0
    %v189 = vadd.f32 %v104, %v188
    %v190 = vpop.f32.mrb[0].mxu0
    %v191 = vpop.f32.mrb[0].mxu0
    %v192 = vpop.f32.mrb[0].mxu0
    %193 = vdwg.mxu0
    %v194 = vmul.f32 %v189, 0.5
    %v195 = vmul.f32 %v189, 0.70710677
    %v196 = verf.f32.pop %v195
    %v197 = vadd.f32 %v196, 1.0
    %v198 = vmul.f32 %v194, %v197
    %v199 = vpack.c.bf16 %v198, %v198
    %v200 = vld [vmem:[#allocation7] sm:$0xf]
    %v201 = vld [vmem:[#allocation7 + $0x4] sm:$0xf]
    %v202 = vld [vmem:[#allocation7 + $0x8] sm:$0xf]
    %v203 = vld [vmem:[#allocation7 + $0xc] sm:$0xf]
    %v204 = vld [vmem:[#allocation7 + $0x10] sm:$0xf]
    %v205 = vld [vmem:[#allocation7 + $0x14] sm:$0xf]
    %v206 = vld [vmem:[#allocation7 + $0x18] sm:$0xf]
    %v207 = vld [vmem:[#allocation7 + $0x1c] sm:$0xf]
    %v208 = vld [vmem:[#allocation7 + $0x20] sm:$0xf]
    %v209 = vld [vmem:[#allocation7 + $0x24] sm:$0xf]
    %v210 = vld [vmem:[#allocation7 + $0x28] sm:$0xf]
    %v211 = vld [vmem:[#allocation7 + $0x2c] sm:$0xf]
    %v212 = vld [vmem:[#allocation7 + $0x30] sm:$0xf]
    %v213 = vld [vmem:[#allocation7 + $0x34] sm:$0xf]
    %v214 = vld [vmem:[#allocation7 + $0x38] sm:$0xf]
    %v215 = vld [vmem:[#allocation7 + $0x3c] sm:$0xf]
    %v216 = vld [vmem:[%s4] sm:$0x1]
    %v218 = vlaneseq
    %v219 = vshrl.u32 %v218, 7
    %v220 = vsub.s32 0, %v219
    %v221 = vrot.slane %v216, %v220
    %v239 = vunpack.c.l.b16 %v200
    %v240 = vunpack.c.l.b16 %v201
    %v241 = vunpack.c.l.b16 %v202
    %v242 = vunpack.c.l.b16 %v203
    %v243 = vunpack.c.l.b16 %v204
    %v244 = vunpack.c.l.b16 %v205
    %v245 = vunpack.c.l.b16 %v206
    %v246 = vunpack.c.l.b16 %v207
    %v247 = vunpack.c.l.b16 %v208
    %v248 = vunpack.c.l.b16 %v209
    %v249 = vunpack.c.l.b16 %v210
    %v250 = vunpack.c.l.b16 %v211
    %v251 = vunpack.c.l.b16 %v212
    %v252 = vunpack.c.l.b16 %v213
    %v253 = vunpack.c.l.b16 %v214
    %v254 = vunpack.c.l.b16 %v215
    %v255 = vpack.c.b16 %v240, %v239
    %v256 = vpack.c.b16 %v242, %v241
    %v257 = vpack.c.b16 %v244, %v243
    %v258 = vpack.c.b16 %v246, %v245
    %v259 = vpack.c.b16 %v248, %v247
    %v260 = vpack.c.b16 %v250, %v249
    %v261 = vpack.c.b16 %v252, %v251
    %v262 = vpack.c.b16 %v254, %v253
    %271 = vmatprep.subr.bf16.mxu0 0
    %272 = vmatpush1.bf16.msra.mxu0 %v255
    %273 = vmatprep.subr.bf16.mxu0 0
    %274 = vmatpush1.bf16.msra.mxu0 %v256
    %275 = vmatprep.subr.bf16.mxu0 0
    %276 = vmatpush1.bf16.msra.mxu0 %v257
    %277 = vmatprep.subr.bf16.mxu0 0
    %278 = vmatpush1.bf16.msra.mxu0 %v258
    %279 = vmatprep.subr.bf16.mxu0 0
    %280 = vmatpush1.bf16.msra.mxu0 %v259
    %281 = vmatprep.subr.bf16.mxu0 0
    %282 = vmatpush1.bf16.msra.mxu0 %v260
    %283 = vmatprep.subr.bf16.mxu0 0
    %284 = vmatpush1.bf16.msra.mxu0 %v261
    %285 = vmatprep.subr.bf16.mxu0 0
    %286 = vmatpush1.bf16.msra.mxu0 %v262
    %287 = vmatprep.subr.bf16.mxu0 0
    %288 = vmatpush1.bf16.msra.mxu0 0
    %289 = vmatprep.subr.bf16.mxu0 0
    %290 = vmatpush1.bf16.msra.mxu0 0
    %291 = vmatprep.subr.bf16.mxu0 0
    %292 = vmatpush1.bf16.msra.mxu0 0
    %293 = vmatprep.subr.bf16.mxu0 0
    %294 = vmatpush1.bf16.msra.mxu0 0
    %295 = vmatprep.subr.bf16.mxu0 0
    %296 = vmatpush1.bf16.msra.mxu0 0
    %297 = vmatprep.subr.bf16.mxu0 0
    %298 = vmatpush1.bf16.msra.mxu0 0
    %299 = vmatprep.subr.bf16.mxu0 0
    %300 = vmatpush1.bf16.msra.mxu0 0
    %301 = vmatprep.subr.bf16.mxu0 0
    %302 = vmatpush1.bf16.msra.mxu0 0
    %303 = vmatprep.mubr.bf16.mxu0 0
    %304 = vmatmul.mubr.bf16.gmra.mrb[0].mxu0 %v199
    %v305 = vpop.f32.mrb[0].mxu0
    %v306 = vadd.f32 %v221, %v305
    %v307 = vpop.f32.mrb[0].mxu0
    %v308 = vpop.f32.mrb[0].mxu0
    %v309 = vpop.f32.mrb[0].mxu0
    %310 = vdwg.mxu0
    %v311 = vmul.f32 %v306, 0.5
    %v312 = vmul.f32 %v306, 0.70710677
    %v313 = verf.f32.pop %v312
    %v314 = vadd.f32 %v313, 1.0
    %v315 = vmul.f32 %v311, %v314
    %v316 = vpack.c.bf16 %v315, %v315
    %s317 = scalar_lea.vmem [#allocation7], 64
    %v318 = vld [vmem:[%s317] sm:$0xf]
    %v319 = vld [vmem:[%s317 + $0x4] sm:$0xf]
    %v320 = vld [vmem:[%s317 + $0x8] sm:$0xf]
    %v321 = vld [vmem:[%s317 + $0xc] sm:$0xf]
    %v322 = vld [vmem:[%s317 + $0x10] sm:$0xf]
    %v323 = vld [vmem:[%s317 + $0x14] sm:$0xf]
    %v324 = vld [vmem:[%s317 + $0x18] sm:$0xf]
    %v325 = vld [vmem:[%s317 + $0x1c] sm:$0xf]
    %v326 = vld [vmem:[%s317 + $0x20] sm:$0xf]
    %v327 = vld [vmem:[%s317 + $0x24] sm:$0xf]
    %v328 = vld [vmem:[%s317 + $0x28] sm:$0xf]
    %v329 = vld [vmem:[%s317 + $0x2c] sm:$0xf]
    %v330 = vld [vmem:[%s317 + $0x30] sm:$0xf]
    %v331 = vld [vmem:[%s317 + $0x34] sm:$0xf]
    %v332 = vld [vmem:[%s317 + $0x38] sm:$0xf]
    %v333 = vld [vmem:[%s317 + $0x3c] sm:$0xf]
    %s334 = scalar_lea.vmem %s4, 1
    %v335 = vld [vmem:[%s334] sm:$0x1]
    %v337 = vlaneseq
    %v338 = vshrl.u32 %v337, 7
    %v339 = vsub.s32 0, %v338
    %v340 = vrot.slane %v335, %v339
    %v358 = vunpack.c.l.b16 %v318
    %v359 = vunpack.c.l.b16 %v319
    %v360 = vunpack.c.l.b16 %v320
    %v361 = vunpack.c.l.b16 %v321
    %v362 = vunpack.c.l.b16 %v322
    %v363 = vunpack.c.l.b16 %v323
    %v364 = vunpack.c.l.b16 %v324
    %v365 = vunpack.c.l.b16 %v325
    %v366 = vunpack.c.l.b16 %v326
    %v367 = vunpack.c.l.b16 %v327
    %v368 = vunpack.c.l.b16 %v328
    %v369 = vunpack.c.l.b16 %v329
    %v370 = vunpack.c.l.b16 %v330
    %v371 = vunpack.c.l.b16 %v331
    %v372 = vunpack.c.l.b16 %v332
    %v373 = vunpack.c.l.b16 %v333
    %v374 = vpack.c.b16 %v359, %v358
    %v375 = vpack.c.b16 %v361, %v360
    %v376 = vpack.c.b16 %v363, %v362
    %v377 = vpack.c.b16 %v365, %v364
    %v378 = vpack.c.b16 %v367, %v366
    %v379 = vpack.c.b16 %v369, %v368
    %v380 = vpack.c.b16 %v371, %v370
    %v381 = vpack.c.b16 %v373, %v372
    %390 = vmatprep.subr.bf16.mxu0 0
    %391 = vmatpush1.bf16.msra.mxu0 %v374
    %392 = vmatprep.subr.bf16.mxu0 0
    %393 = vmatpush1.bf16.msra.mxu0 %v375
    %394 = vmatprep.subr.bf16.mxu0 0
    %395 = vmatpush1.bf16.msra.mxu0 %v376
    %396 = vmatprep.subr.bf16.mxu0 0
    %397 = vmatpush1.bf16.msra.mxu0 %v377
    %398 = vmatprep.subr.bf16.mxu0 0
    %399 = vmatpush1.bf16.msra.mxu0 %v378
    %400 = vmatprep.subr.bf16.mxu0 0
    %401 = vmatpush1.bf16.msra.mxu0 %v379
    %402 = vmatprep.subr.bf16.mxu0 0
    %403 = vmatpush1.bf16.msra.mxu0 %v380
    %404 = vmatprep.subr.bf16.mxu0 0
    %405 = vmatpush1.bf16.msra.mxu0 %v381
    %406 = vmatprep.subr.bf16.mxu0 0
    %407 = vmatpush1.bf16.msra.mxu0 0
    %408 = vmatprep.subr.bf16.mxu0 0
    %409 = vmatpush1.bf16.msra.mxu0 0
    %410 = vmatprep.subr.bf16.mxu0 0
    %411 = vmatpush1.bf16.msra.mxu0 0
    %412 = vmatprep.subr.bf16.mxu0 0
    %413 = vmatpush1.bf16.msra.mxu0 0
    %414 = vmatprep.subr.bf16.mxu0 0
    %415 = vmatpush1.bf16.msra.mxu0 0
    %416 = vmatprep.subr.bf16.mxu0 0
    %417 = vmatpush1.bf16.msra.mxu0 0
    %418 = vmatprep.subr.bf16.mxu0 0
    %419 = vmatpush1.bf16.msra.mxu0 0
    %420 = vmatprep.subr.bf16.mxu0 0
    %421 = vmatpush1.bf16.msra.mxu0 0
    %422 = vmatprep.mubr.bf16.mxu0 0
    %423 = vmatmul.mubr.bf16.gmra.mrb[0].mxu0 %v316
    %v424 = vpop.f32.mrb[0].mxu0
    %v425 = vadd.f32 %v340, %v424
    %v426 = vpop.f32.mrb[0].mxu0
    %v427 = vpop.f32.mrb[0].mxu0
    %v428 = vpop.f32.mrb[0].mxu0
    %429 = vdwg.mxu0
    %v430 = vmul.f32 %v425, 0.5
    %v431 = vmul.f32 %v425, 0.70710677
    %v432 = verf.f32.pop %v431
    %v433 = vadd.f32 %v432, 1.0
    %v434 = vmul.f32 %v430, %v433
    %v435 = vpack.c.bf16 %v434, %v434
    %v436 = vld [vmem:[#allocation8] sm:$0xf]
    %v437 = vld [vmem:[#allocation8 + $0x4] sm:$0xf]
    %v438 = vld [vmem:[#allocation8 + $0x8] sm:$0xf]
    %v439 = vld [vmem:[#allocation8 + $0xc] sm:$0xf]
    %v440 = vld [vmem:[#allocation8 + $0x10] sm:$0xf]
    %v441 = vld [vmem:[#allocation8 + $0x14] sm:$0xf]
    %v442 = vld [vmem:[#allocation8 + $0x18] sm:$0xf]
    %v443 = vld [vmem:[#allocation8 + $0x1c] sm:$0xf]
    %v444 = vld [vmem:[#allocation8 + $0x20] sm:$0xf]
    %v445 = vld [vmem:[#allocation8 + $0x24] sm:$0xf]
    %v446 = vld [vmem:[#allocation8 + $0x28] sm:$0xf]
    %v447 = vld [vmem:[#allocation8 + $0x2c] sm:$0xf]
    %v448 = vld [vmem:[#allocation8 + $0x30] sm:$0xf]
    %v449 = vld [vmem:[#allocation8 + $0x34] sm:$0xf]
    %v450 = vld [vmem:[#allocation8 + $0x38] sm:$0xf]
    %v451 = vld [vmem:[#allocation8 + $0x3c] sm:$0xf]
    %v452 = vld [vmem:[%s6] sm:$0x1]
    %v454 = vlaneseq
    %v455 = vshrl.u32 %v454, 7
    %v456 = vsub.s32 0, %v455
    %v457 = vrot.slane %v452, %v456
    %v475 = vunpack.c.l.b16 %v436
    %v476 = vunpack.c.l.b16 %v437
    %v477 = vunpack.c.l.b16 %v438
    %v478 = vunpack.c.l.b16 %v439
    %v479 = vunpack.c.l.b16 %v440
    %v480 = vunpack.c.l.b16 %v441
    %v481 = vunpack.c.l.b16 %v442
    %v482 = vunpack.c.l.b16 %v443
    %v483 = vunpack.c.l.b16 %v444
    %v484 = vunpack.c.l.b16 %v445
    %v485 = vunpack.c.l.b16 %v446
    %v486 = vunpack.c.l.b16 %v447
    %v487 = vunpack.c.l.b16 %v448
    %v488 = vunpack.c.l.b16 %v449
    %v489 = vunpack.c.l.b16 %v450
    %v490 = vunpack.c.l.b16 %v451
    %v491 = vpack.c.b16 %v476, %v475
    %v492 = vpack.c.b16 %v478, %v477
    %v493 = vpack.c.b16 %v480, %v479
    %v494 = vpack.c.b16 %v482, %v481
    %v495 = vpack.c.b16 %v484, %v483
    %v496 = vpack.c.b16 %v486, %v485
    %v497 = vpack.c.b16 %v488, %v487
    %v498 = vpack.c.b16 %v490, %v489
    %507 = vmatprep.subr.bf16.mxu0 0
    %508 = vmatpush1.bf16.msra.mxu0 %v491
    %509 = vmatprep.subr.bf16.mxu0 0
    %510 = vmatpush1.bf16.msra.mxu0 %v492
    %511 = vmatprep.subr.bf16.mxu0 0
    %512 = vmatpush1.bf16.msra.mxu0 %v493
    %513 = vmatprep.subr.bf16.mxu0 0
    %514 = vmatpush1.bf16.msra.mxu0 %v494
    %515 = vmatprep.subr.bf16.mxu0 0
    %516 = vmatpush1.bf16.msra.mxu0 %v495
    %517 = vmatprep.subr.bf16.mxu0 0
    %518 = vmatpush1.bf16.msra.mxu0 %v496
    %519 = vmatprep.subr.bf16.mxu0 0
    %520 = vmatpush1.bf16.msra.mxu0 %v497
    %521 = vmatprep.subr.bf16.mxu0 0
    %522 = vmatpush1.bf16.msra.mxu0 %v498
    %523 = vmatprep.subr.bf16.mxu0 0
    %524 = vmatpush1.bf16.msra.mxu0 0
    %525 = vmatprep.subr.bf16.mxu0 0
    %526 = vmatpush1.bf16.msra.mxu0 0
    %527 = vmatprep.subr.bf16.mxu0 0
    %528 = vmatpush1.bf16.msra.mxu0 0
    %529 = vmatprep.subr.bf16.mxu0 0
    %530 = vmatpush1.bf16.msra.mxu0 0
    %531 = vmatprep.subr.bf16.mxu0 0
    %532 = vmatpush1.bf16.msra.mxu0 0
    %533 = vmatprep.subr.bf16.mxu0 0
    %534 = vmatpush1.bf16.msra.mxu0 0
    %535 = vmatprep.subr.bf16.mxu0 0
    %536 = vmatpush1.bf16.msra.mxu0 0
    %537 = vmatprep.subr.bf16.mxu0 0
    %538 = vmatpush1.bf16.msra.mxu0 0
    %539 = vmatprep.mubr.bf16.mxu0 0
    %540 = vmatmul.mubr.bf16.gmra.mrb[0].mxu0 %v435
    %v541 = vpop.f32.mrb[0].mxu0
    %v542 = vadd.f32 %v457, %v541
    %v543 = vpop.f32.mrb[0].mxu0
    %v544 = vpop.f32.mrb[0].mxu0
    %v545 = vpop.f32.mrb[0].mxu0
    %546 = vdwg.mxu0
    %547 = vst [vmem:[#allocation10] sm:$0xff] %v542
    // Predicated region
    $region46: #{tpu_custom_call.1} parent=1 // pred_check
      _
    $region47: #{tpu_custom_call.1} parent=1 // pred_check_branch
      %549 = sbr.rel (0) target = $region49
    $region48: #{tpu_custom_call.1} parent=1 // pred_region
      %s551 = ssub.s32 128, 128
      %552 = vsyncadd [#allocation4], %s551
      %s554 = sshll.u32 [#allocation10], 4
      %s555 = int_to_ptr.vmem [resolvable:$true] %s554
      %557 = dma.vmem_to_hbm [thread:$0]  %s555, 128, %s7, [#allocation4]
    $region49: #{tpu_custom_call.1} parent=1 // pred_fallthru
      _
    // Predicated region
    $region50: #{tpu_custom_call.1} parent=1 // pred_check
      _
    $region51: #{tpu_custom_call.1} parent=1 // pred_check_branch
      %559 = sbr.rel (0) target = $region53
    $region52: #{tpu_custom_call.1} parent=1 // pred_region
      %560 = dma.done [#allocation4], 128
    $region53: #{tpu_custom_call.1} parent=1 // pred_fallthru
      _
    %561 = vsyncpa [#allocation3], 1
    %562 = vsyncpa [#allocation6], 1
    %563 = vsyncpa [#allocation9], 1
    %564 = vsyncpa [#allocation4], 1

</llo_original>
